<compile_context>
chip_gen: v5e
topology: v5e:2x2
jax: 0.10.0
libtpu: 0.0.40
codegen_flags: <defaults>
</compile_context>

<pallas_src>
import math

import jax
import jax.numpy as jnp
from jax.experimental import pallas as pl
from jax.experimental.pallas import tpu as pltpu

_NEG = -1e30      # logit padding value: exp() underflows to 0, no inf-inf NaNs
_B_TILE = 8       # sublane-aligned batch tile


def _round_up(x, m):
    return (x + m - 1) // m * m


def _rnn_seq_kernel(x_ref, h0_ref, wx_ref, wh_ref, b_ref,
                    out_ref, hfin_ref, h_acc):
    t = pl.program_id(1)
    h_lane = hfin_ref.shape[-1]

    @pl.when(t == 0)
    def _():
        h_acc[...] = h0_ref[...]

    x = x_ref[0]                        # (B_TILE, I_pad)
    h = h_acc[...]                      # (B_TILE, H_lane)

    # fused i2h/i2o: z[:, :h_lane] = new hidden, z[:, h_lane:] = logits
    z = (jnp.dot(x, wx_ref[...], preferred_element_type=jnp.float32)
         + jnp.dot(h, wh_ref[...], preferred_element_type=jnp.float32)
         + b_ref[...])                  # (B_TILE, F)

    h_new = z[:, :h_lane]
    logits = z[:, h_lane:]

    # numerically stable LogSoftmax(dim=1); padded lanes carry -1e30 bias
    m = jnp.max(logits, axis=-1, keepdims=True)
    shifted = logits - m
    lse = jnp.log(jnp.sum(jnp.exp(shifted), axis=-1, keepdims=True))
    out_ref[0] = (shifted - lse).astype(out_ref.dtype)

    h_acc[...] = h_new

    @pl.when(t == pl.num_programs(1) - 1)
    def _():
        hfin_ref[...] = h_acc[...].astype(hfin_ref.dtype)


def pack_params(params, input_size):
    """One-time repack of PyTorch-layout Linear params into MXU-friendly,
    lane-padded, x/h-split, i2h+i2o-fused weight blocks (done once, off the
    per-step path)."""
    w_i2h = jnp.asarray(params["w_i2h"], jnp.float32)   # (H, I+H)
    w_i2o = jnp.asarray(params["w_i2o"], jnp.float32)   # (O, I+H)
    b_i2h = jnp.asarray(params["b_i2h"], jnp.float32)   # (H,)
    b_i2o = jnp.asarray(params["b_i2o"], jnp.float32)   # (O,)
    H = w_i2h.shape[0]
    O = w_i2o.shape[0]
    I = input_size
    i_pad = _round_up(I, 128)
    h_lane = _round_up(H, 128)
    o_lane = _round_up(O, 128)
    F = h_lane + o_lane

    wx = jnp.zeros((i_pad, F), jnp.float32)
    wx = wx.at[:I, :H].set(w_i2h[:, :I].T)
    wx = wx.at[:I, h_lane:h_lane + O].set(w_i2o[:, :I].T)

    wh = jnp.zeros((h_lane, F), jnp.float32)
    wh = wh.at[:H, :H].set(w_i2h[:, I:].T)
    wh = wh.at[:H, h_lane:h_lane + O].set(w_i2o[:, I:].T)

    b = jnp.zeros((1, F), jnp.float32)
    b = b.at[0, :H].set(b_i2h)
    b = b.at[0, h_lane:h_lane + O].set(b_i2o)
    b = b.at[0, h_lane + O:].set(_NEG)      # dead logit lanes never win softmax

    return {"wx": wx, "wh": wh, "b": b,
            "I": I, "H": H, "O": O,
            "i_pad": i_pad, "h_lane": h_lane, "o_lane": o_lane}


def rnn_sequence(x_seq, h0, packed):
    """Run the RNN cell over a whole sequence in one fused Pallas call.

    x_seq : (T, B, I) float32
    h0    : (B, H)    float32
    returns (log_softmax outputs (T, B, O), final hidden (B, H))
    """
    T, B, I = x_seq.shape
    H, O = packed["H"], packed["O"]
    i_pad, h_lane, o_lane = packed["i_pad"], packed["h_lane"], packed["o_lane"]
    F = h_lane + o_lane

    b_pad = _round_up(max(B, _B_TILE), _B_TILE)
    nb = b_pad // _B_TILE

    x_p = jnp.zeros((T, b_pad, i_pad), jnp.float32)
    x_p = x_p.at[:, :B, :I].set(x_seq.astype(jnp.float32))
    h_p = jnp.zeros((b_pad, h_lane), jnp.float32)
    h_p = h_p.at[:B, :H].set(h0.astype(jnp.float32))

    out_p, hfin_p = pl.pallas_call(
        _rnn_seq_kernel,
        out_shape=(jax.ShapeDtypeStruct((T, b_pad, o_lane), jnp.float32),
                   jax.ShapeDtypeStruct((b_pad, h_lane), jnp.float32)),
        grid_spec=pltpu.PrefetchScalarGridSpec(
            num_scalar_prefetch=0,
            grid=(nb, T),
            in_specs=[
                pl.BlockSpec((1, _B_TILE, i_pad), lambda bt, t: (t, bt, 0)),
                pl.BlockSpec((_B_TILE, h_lane), lambda bt, t: (bt, 0)),
                pl.BlockSpec((i_pad, F), lambda bt, t: (0, 0)),   # resident
                pl.BlockSpec((h_lane, F), lambda bt, t: (0, 0)),  # resident
                pl.BlockSpec((1, F), lambda bt, t: (0, 0)),       # resident
            ],
            out_specs=(
                pl.BlockSpec((1, _B_TILE, o_lane), lambda bt, t: (t, bt, 0)),
                pl.BlockSpec((_B_TILE, h_lane), lambda bt, t: (bt, 0)),
            ),
            scratch_shapes=[pltpu.VMEM((_B_TILE, h_lane), jnp.float32)],
        ),
        compiler_params=pltpu.CompilerParams(
            dimension_semantics=("parallel", "arbitrary")),
    )(x_p, h_p, packed["wx"], packed["wh"], packed["b"])

    return out_p[:, :B, :O], hfin_p[:B, :H]


def rnn_cell(input_tensor, hidden_tensor, packed):
    """Single-step forward matching RNN.forward(input, hidden) exactly."""
    out_seq, h_new = rnn_sequence(input_tensor[None], hidden_tensor, packed)
    return out_seq[0], h_new


def init_params(key, input_size, hidden_size, output_size):
    """nn.Linear-style init: U(-1/sqrt(fan_in), +1/sqrt(fan_in))."""
    c = input_size + hidden_size
    k1, k2, k3, k4 = jax.random.split(key, 4)
    bound = 1.0 / math.sqrt(c)
    return {
        "w_i2h": jax.random.uniform(k1, (hidden_size, c), jnp.float32,
                                    -bound, bound),
        "b_i2h": jax.random.uniform(k2, (hidden_size,), jnp.float32,
                                    -bound, bound),
        "w_i2o": jax.random.uniform(k3, (output_size, c), jnp.float32,
                                    -bound, bound),
        "b_i2o": jax.random.uniform(k4, (output_size,), jnp.float32,
                                    -bound, bound),
    }


if __name__ == "__main__":
    key = jax.random.PRNGKey(0)
    k_in, k_par = jax.random.split(key, 2)

    batch = 2
    input_size = 16      # small one-hot character vocab
    hidden_size = 32
    output_size = 8      # number of classes
    seq_len = 8

    x_seq = jax.random.normal(k_in, (seq_len, batch, input_size), jnp.float32)
    h0 = jnp.zeros((batch, hidden_size), jnp.float32)   # init_hidden() analog
    params = init_params(k_par, input_size, hidden_size, output_size)
    packed = pack_params(params, input_size)

    # fused whole-sequence kernel (one pallas_call for all T steps)
    outs, h_final = rnn_sequence(x_seq, h0, packed)
    jax.block_until_ready((outs, h_final))

    # single-step call (exact module forward) through the same kernel
    out0, h1 = rnn_cell(x_seq[0], h0, packed)
    jax.block_until_ready((out0, h1))

    # plain-JAX reference
    def ref_step(x, h):
        comb = jnp.concatenate([x, h], axis=1)
        hid = comb @ params["w_i2h"].T + params["b_i2h"]
        logit = comb @ params["w_i2o"].T + params["b_i2o"]
        return jax.nn.log_softmax(logit, axis=1), hid

    h_ref = h0
    ref_outs = []
    for t in range(seq_len):
        o_ref, h_ref = ref_step(x_seq[t], h_ref)
        ref_outs.append(o_ref)
    ref_outs = jnp.stack(ref_outs)

    assert jnp.allclose(outs, ref_outs, atol=1e-4), "sequence output mismatch"
    assert jnp.allclose(h_final, h_ref, atol=1e-4), "final hidden mismatch"

    o0_ref, h1_ref = ref_step(x_seq[0], h0)
    assert jnp.allclose(out0, o0_ref, atol=1e-4), "single-step output mismatch"
    assert jnp.allclose(h1, h1_ref, atol=1e-4), "single-step hidden mismatch"

    print("KERNEL_OK")
</pallas_src>

<mosaic_0001>
module attributes {stable_mosaic.version = 11 : i64} {
  func.func @_rnn_seq_kernel(%arg0: i32, %arg1: i32, %arg2: memref<1x8x128xf32, #tpu.memory_space<vmem>>, %arg3: memref<8x128xf32, #tpu.memory_space<vmem>>, %arg4: memref<128x256xf32, #tpu.memory_space<vmem>>, %arg5: memref<128x256xf32, #tpu.memory_space<vmem>>, %arg6: memref<1x256xf32, #tpu.memory_space<vmem>>, %arg7: memref<1x8x128xf32, #tpu.memory_space<vmem>>, %arg8: memref<8x128xf32, #tpu.memory_space<vmem>>, %arg9: memref<8x128xf32, #tpu.memory_space<vmem>>) attributes {dimension_semantics = [#tpu.dimension_semantics<parallel>, #tpu.dimension_semantics<arbitrary>], iteration_bounds = array<i64: 1, 8>, scalar_prefetch = 0 : i64, scratch_operands = 1 : i64, tpu.core_type = #tpu.core_type<tc>, window_params = [{transform_indices = @transform_0, window_bounds = array<i64: 1, 8, 128>}, {transform_indices = @transform_1, window_bounds = array<i64: 8, 128>}, {pipeline_mode = #tpu.pipeline_mode<synchronous>, transform_indices = @transform_2, window_bounds = array<i64: 128, 256>}, {pipeline_mode = #tpu.pipeline_mode<synchronous>, transform_indices = @transform_3, window_bounds = array<i64: 128, 256>}, {pipeline_mode = #tpu.pipeline_mode<synchronous>, transform_indices = @transform_4, window_bounds = array<i64: 1, 256>}, {transform_indices = @transform_5, window_bounds = array<i64: 1, 8, 128>}, {transform_indices = @transform_6, window_bounds = array<i64: 8, 128>}]} {
    %c0_i32 = arith.constant 0 : i32
    %0 = arith.cmpi eq, %arg1, %c0_i32 : i32
    %1 = arith.extui %0 : i1 to i32
    %c0_i32_0 = arith.constant 0 : i32
    %2 = arith.cmpi ne, %1, %c0_i32_0 : i32
    scf.if %2 {
      %c0_20 = arith.constant 0 : index
      %c0_21 = arith.constant 0 : index
      %33 = vector.load %arg3[%c0_20, %c0_21] : memref<8x128xf32, #tpu.memory_space<vmem>>, vector<8x128xf32>
      %c0_22 = arith.constant 0 : index
      %c0_23 = arith.constant 0 : index
      %34 = vector.load %arg9[%c0_22, %c0_23] : memref<8x128xf32, #tpu.memory_space<vmem>>, vector<8x128xf32>
      tpu.vector_store %arg9[%c0_22, %c0_23], %33 {strides = array<i32>} : memref<8x128xf32, #tpu.memory_space<vmem>>, vector<8x128xf32>,
    } else {
    }
    %c0 = arith.constant 0 : index
    %c0_1 = arith.constant 0 : index
    %c0_2 = arith.constant 0 : index
    %3 = vector.load %arg2[%c0, %c0_1, %c0_2] : memref<1x8x128xf32, #tpu.memory_space<vmem>>, vector<1x8x128xf32>
    %4 = vector.shape_cast %3 : vector<1x8x128xf32> to vector<8x128xf32>
    %c0_3 = arith.constant 0 : index
    %c0_4 = arith.constant 0 : index
    %5 = vector.load %arg9[%c0_3, %c0_4] : memref<8x128xf32, #tpu.memory_space<vmem>>, vector<8x128xf32>
    %c0_5 = arith.constant 0 : index
    %c0_6 = arith.constant 0 : index
    %6 = vector.load %arg4[%c0_5, %c0_6] : memref<128x256xf32, #tpu.memory_space<vmem>>, vector<128x256xf32>
    %cst = arith.constant dense<0.000000e+00> : vector<8x256xf32>
    %7 = tpu.matmul %4, %6, %cst {dimension_numbers = #tpu.dot_dimension_numbers<[1], [0], [0], [1], [0, 0, 1, 1], [], []>} : vector<8x128xf32>, vector<128x256xf32>, vector<8x256xf32> -> vector<8x256xf32>
    %c0_7 = arith.constant 0 : index
    %c0_8 = arith.constant 0 : index
    %8 = vector.load %arg5[%c0_7, %c0_8] : memref<128x256xf32, #tpu.memory_space<vmem>>, vector<128x256xf32>
    %cst_9 = arith.constant dense<0.000000e+00> : vector<8x256xf32>
    %9 = tpu.matmul %5, %8, %cst_9 {dimension_numbers = #tpu.dot_dimension_numbers<[1], [0], [0], [1], [0, 0, 1, 1], [], []>} : vector<8x128xf32>, vector<128x256xf32>, vector<8x256xf32> -> vector<8x256xf32>
    %10 = arith.addf %7, %9 : vector<8x256xf32>
    %c0_10 = arith.constant 0 : index
    %c0_11 = arith.constant 0 : index
    %11 = vector.load %arg6[%c0_10, %c0_11] : memref<1x256xf32, #tpu.memory_space<vmem>>, vector<1x256xf32>
    %12 = vector.broadcast %11 : vector<1x256xf32> to vector<8x256xf32>
    %13 = arith.addf %10, %12 : vector<8x256xf32>
    %14 = vector.extract_strided_slice %13 {offsets = [0, 0], sizes = [8, 128], strides = [1, 1]} : vector<8x256xf32> to vector<8x128xf32>
    %15 = vector.extract_strided_slice %13 {offsets = [0, 128], sizes = [8, 128], strides = [1, 1]} : vector<8x256xf32> to vector<8x128xf32>
    %cst_12 = arith.constant dense<0xFF800000> : vector<8xf32>
    %16 = vector.multi_reduction <maximumf>, %15, %cst_12 [1] : vector<8x128xf32> to vector<8xf32>
    %17 = vector.shape_cast %16 : vector<8xf32> to vector<8x1xf32>
    %18 = vector.broadcast %17 : vector<8x1xf32> to vector<8x128xf32>
    %19 = arith.subf %15, %18 : vector<8x128xf32>
    %20 = math.exp %19 : vector<8x128xf32>
    %cst_13 = arith.constant dense<0.000000e+00> : vector<8xf32>
    %21 = vector.multi_reduction <add>, %20, %cst_13 [1] : vector<8x128xf32> to vector<8xf32>
    %22 = vector.shape_cast %21 : vector<8xf32> to vector<8x1xf32>
    %23 = math.log %22 : vector<8x1xf32>
    %24 = vector.broadcast %23 : vector<8x1xf32> to vector<8x128xf32>
    %25 = arith.subf %19, %24 : vector<8x128xf32>
    %c0_14 = arith.constant 0 : index
    %c0_15 = arith.constant 0 : index
    %c0_16 = arith.constant 0 : index
    %26 = vector.load %arg7[%c0_14, %c0_15, %c0_16] : memref<1x8x128xf32, #tpu.memory_space<vmem>>, vector<1x8x128xf32>
    %27 = vector.shape_cast %26 : vector<1x8x128xf32> to vector<8x128xf32>
    %28 = vector.shape_cast %25 : vector<8x128xf32> to vector<1x8x128xf32>
    tpu.vector_store %arg7[%c0_14, %c0_15, %c0_16], %28 {strides = array<i32>} : memref<1x8x128xf32, #tpu.memory_space<vmem>>, vector<1x8x128xf32>,
    %c0_17 = arith.constant 0 : index
    %c0_18 = arith.constant 0 : index
    %29 = vector.load %arg9[%c0_17, %c0_18] : memref<8x128xf32, #tpu.memory_space<vmem>>, vector<8x128xf32>
    tpu.vector_store %arg9[%c0_17, %c0_18], %14 {strides = array<i32>} : memref<8x128xf32, #tpu.memory_space<vmem>>, vector<8x128xf32>,
    %c7_i32 = arith.constant 7 : i32
    %30 = arith.cmpi eq, %arg1, %c7_i32 : i32
    %31 = arith.extui %30 : i1 to i32
    %c0_i32_19 = arith.constant 0 : i32
    %32 = arith.cmpi ne, %31, %c0_i32_19 : i32
    scf.if %32 {
      %c0_20 = arith.constant 0 : index
      %c0_21 = arith.constant 0 : index
      %33 = vector.load %arg9[%c0_20, %c0_21] : memref<8x128xf32, #tpu.memory_space<vmem>>, vector<8x128xf32>
      %c0_22 = arith.constant 0 : index
      %c0_23 = arith.constant 0 : index
      %34 = vector.load %arg8[%c0_22, %c0_23] : memref<8x128xf32, #tpu.memory_space<vmem>>, vector<8x128xf32>
      tpu.vector_store %arg8[%c0_22, %c0_23], %33 {strides = array<i32>} : memref<8x128xf32, #tpu.memory_space<vmem>>, vector<8x128xf32>,
    } else {
    }
    return
  }
  func.func @transform_0(%arg0: i32, %arg1: i32) -> (i32, i32, i32) {
    %c0_i32 = arith.constant 0 : i32
    %c0_i32_0 = arith.constant 0 : i32
    return %arg1, %arg0, %c0_i32 : i32, i32, i32
  }
  func.func @transform_1(%arg0: i32, %arg1: i32) -> (i32, i32) {
    %c0_i32 = arith.constant 0 : i32
    %c0_i32_0 = arith.constant 0 : i32
    return %arg0, %c0_i32 : i32, i32
  }
  func.func @transform_2(%arg0: i32, %arg1: i32) -> (i32, i32) {
    %c0_i32 = arith.constant 0 : i32
    %c0_i32_0 = arith.constant 0 : i32
    %c0_i32_1 = arith.constant 0 : i32
    return %c0_i32, %c0_i32_0 : i32, i32
  }
  func.func @transform_3(%arg0: i32, %arg1: i32) -> (i32, i32) {
    %c0_i32 = arith.constant 0 : i32
    %c0_i32_0 = arith.constant 0 : i32
    %c0_i32_1 = arith.constant 0 : i32
    return %c0_i32, %c0_i32_0 : i32, i32
  }
  func.func @transform_4(%arg0: i32, %arg1: i32) -> (i32, i32) {
    %c0_i32 = arith.constant 0 : i32
    %c0_i32_0 = arith.constant 0 : i32
    %c0_i32_1 = arith.constant 0 : i32
    return %c0_i32, %c0_i32_0 : i32, i32
  }
  func.func @transform_5(%arg0: i32, %arg1: i32) -> (i32, i32, i32) {
    %c0_i32 = arith.constant 0 : i32
    %c0_i32_0 = arith.constant 0 : i32
    return %arg1, %arg0, %c0_i32 : i32, i32, i32
  }
  func.func @transform_6(%arg0: i32, %arg1: i32) -> (i32, i32) {
    %c0_i32 = arith.constant 0 : i32
    %c0_i32_0 = arith.constant 0 : i32
    return %arg0, %c0_i32 : i32, i32
  }
}

</mosaic_0001>

<llo_original>
// kernel: tpu_custom_call.1
$region0: #{tpu_custom_call.1}
  #allocation0 [shape = 'u32[]', space=smem, size = 0x4, offset = 0x4, fixed_abs, tag = 'smem constant byte address 0x4 - core index']
  #allocation1 [shape = 'u32[72,128]{1,0:T(1,128)}', space=vmem, size = 0x9000, scoped, tag = 'internal scratch']
  #allocation2 [shape = 'f32[8,128]{1,0:T(8,128)}', space=vmem, size = 0x1000, scoped, tag = 'scratch operand']
  %s0 = inlined_call_operand.hbm [shape: f32[8,8,128], index: 0, kind: input, shape index: {}]
  %s1 = inlined_call_operand.hbm [shape: f32[8,128], index: 1, kind: input, shape index: {}]
  %s2 = inlined_call_operand.hbm [shape: f32[128,256], index: 2, kind: input, shape index: {}]
  %s3 = inlined_call_operand.hbm [shape: f32[128,256], index: 3, kind: input, shape index: {}]
  %s4 = inlined_call_operand.vmem [shape: f32[1,256], index: 4, kind: input, shape index: {}]
  %s5 = inlined_call_operand.hbm [shape: f32[8,8,128], index: 5, kind: output, shape index: {0}]
  %s6 = inlined_call_operand.hbm [shape: f32[8,128], index: 6, kind: output, shape index: {1}]
  %7 = xla_tuple %s5, %s6
  %s8 = sld [smem:[#allocation0]]
  $region85: #{tpu_custom_call.1} parent=0
    _
  %s10 = ssub.s32 1, %s8
  %s11 = scalar_select 0, %s10, %s8
  $region1: #{tpu_custom_call.1} parent=0
    #allocation3 [shape = 'u8[8192]{0}', space=vmem, size = 0x2000, scoped, tag = 'input window, operand 0']
    #allocation4 [shape = 's32[2]{0}', space=sflag, size = 0x8, scoped, tag = 'scoped memory for tpu_custom_call.1']
    #allocation5 [shape = 's32[2]{0}', space=sflag, size = 0x8, scoped, tag = 'scoped memory for tpu_custom_call.1']
    #allocation6 [shape = 'u8[4096]{0}', space=vmem, size = 0x1000, scoped, tag = 'input window, operand 1, single buffered']
    #allocation7 [shape = 's32[1]{0}', space=sflag, size = 0x4, scoped, tag = 'scoped memory for tpu_custom_call.1']
    #allocation8 [shape = 'u8[131072]{0}', space=vmem, size = 0x20000, scoped, tag = 'input window, operand 2, single buffered']
    #allocation9 [shape = 'u8[131072]{0}', space=vmem, size = 0x20000, scoped, tag = 'input window, operand 3, single buffered']
    #allocation10 [shape = 's32[1]{0}', space=sflag, size = 0x4, scoped, tag = 'scoped memory for tpu_custom_call.1']
    #allocation11 [shape = 'u8[8192]{0}', space=vmem, size = 0x2000, scoped, tag = 'output window, operand 0']
    #allocation12 [shape = 'u8[4096]{0}', space=vmem, size = 0x1000, scoped, tag = 'output window, operand 1, single buffered']
    #allocation13 [shape = 's32[1]{0}', space=sflag, size = 0x4, scoped, tag = 'scoped memory for tpu_custom_call.1']
    %12 = vsyncpa [#allocation4], 0
    %s13 = scalar_lea.sflag [#allocation4], 1
    %14 = vsyncpa %s13, 0
    %15 = vsyncpa [#allocation7], 0
    %16 = vsyncpa [#allocation10], 0
    %17 = vsyncpa [#allocation5], 0
    %s18 = scalar_lea.sflag [#allocation5], 1
    %19 = vsyncpa %s18, 0
    %20 = vsyncpa [#allocation13], 0
    loop: start=0, step=1, limit=10
    $region2: #{tpu_custom_call.1} parent=1 // loop_pre_header
      _
    $region3: #{tpu_custom_call.1} parent=1 // loop_header
      %s22 = sphi 0, %s26
      %p23 = scmp.ge.s32.totalorder %s22, 10
      %s29 = sphi 0, %s41
      %s30 = sphi 0, %s37
      %s31 = sphi 0, %s29
      %s32 = sphi 0, %s30
      %s33 = sphi 0, %s31
      %s34 = sphi 0, %s32
      %s46 = sphi 0, %s48
      %s49 = sphi 0, %s46
      %s50 = sphi 0, %s49
      %s66 = sphi 0, %s50
      %s72 = sphi 0, %s74
      %s75 = sphi 0, %s72
      %s76 = sphi 0, %s75
      %s92 = sphi 0, %s76
      %s96 = sphi 0, %s96
      %s98 = sphi 0, %s96
      %s99 = sphi 0, %s98
      %s113 = sphi 0, %s99
      %s117 = sphi 0, %s117
      %s119 = sphi 0, %s117
      %s120 = sphi 0, %s119
      %s134 = sphi 0, %s120
      %s138 = sphi 0, %s138
      %s140 = sphi 0, %s138
      %s141 = sphi 0, %s140
      %s155 = sphi 0, %s141
      %s163 = sphi 0, %s165
      %s166 = sphi 0, %s163
      %s167 = sphi 0, %s166
      %s183 = sphi 0, %s167
      %s189 = sphi 0, %s191
      %s192 = sphi 0, %s189
      %s193 = sphi 0, %s192
      %s209 = sphi 0, %s193
    $region4: #{tpu_custom_call.1} parent=1 // loop_header_branch
      %25 = sbr.rel (%p23) target = $region8
    $region5: #{tpu_custom_call.1} parent=1 // loop_body
      %s27 = ssub.s32 %s22, 1
      %s28 = ssub.s32 %s22, 2
      %s35 = sadd.s32 1, %s30
      %p36 = scmp.ge.s32.totalorder %s35, 8
      %s37 = scalar_select %p36, 0, %s35
      %s38 = sadd.s32 1, %s29
      %s39 = scalar_select %p36, %s38, %s29
      %p40 = scmp.ge.s32.totalorder %s39, 1
      %s41 = scalar_select %p40, 0, %s39
      %s42 = ssub.s32 %s30, %s37
      %s43 = ssub.s32 %s29, %s41
      %s44 = sor.u32 %s42, %s43
      %p45 = scmp.eq.s32.totalorder %s44, 0
      %s47 = sadd.s32 %s46, 1
      %s48 = scalar_select %p45, %s46, %s47
      %p51 = pneg %p45
      %p52 = scmp.eq.s32.totalorder %s22, 7
      %p53 = por %p51, %p52
      %p54 = scmp.ne.s32.totalorder %s46, %s49
      %p55 = scmp.eq.s32.totalorder %s22, 0
      %p56 = por %p54, %p55
      %p57 = scmp.ne.s32.totalorder %s46, %s49
      %p58 = scmp.eq.s32.totalorder %s27, 7
      %p59 = por %p57, %p58
      %p60 = scmp.ne.s32.totalorder %s49, %s50
      %p61 = scmp.eq.s32.totalorder %s27, 0
      %p62 = por %p60, %p61
      %p63 = scmp.ne.s32.totalorder %s49, %s50
      %p64 = scmp.eq.s32.totalorder %s28, 7
      %p65 = por %p63, %p64
      %p67 = scmp.ne.s32.totalorder %s50, %s66
      %p68 = scmp.eq.s32.totalorder %s28, 0
      %p69 = por %p67, %p68
      %s70 = ssub.s32 %s29, %s41
      %p71 = scmp.eq.s32.totalorder %s70, 0
      %s73 = sadd.s32 %s72, 1
      %s74 = scalar_select %p71, %s72, %s73
      %p77 = pneg %p71
      %p78 = scmp.eq.s32.totalorder %s22, 7
      %p79 = por %p77, %p78
      %p80 = scmp.ne.s32.totalorder %s72, %s75
      %p81 = scmp.eq.s32.totalorder %s22, 0
      %p82 = por %p80, %p81
      %p83 = scmp.ne.s32.totalorder %s72, %s75
      %p84 = scmp.eq.s32.totalorder %s27, 7
      %p85 = por %p83, %p84
      %p86 = scmp.ne.s32.totalorder %s75, %s76
      %p87 = scmp.eq.s32.totalorder %s27, 0
      %p88 = por %p86, %p87
      %p89 = scmp.ne.s32.totalorder %s75, %s76
      %p90 = scmp.eq.s32.totalorder %s28, 7
      %p91 = por %p89, %p90
      %p93 = scmp.ne.s32.totalorder %s76, %s92
      %p94 = scmp.eq.s32.totalorder %s28, 0
      %p95 = por %p93, %p94
      %s97 = sadd.s32 %s96, 1
      %p100 = scmp.eq.s32.totalorder %s22, 7
      %p101 = scmp.ne.s32.totalorder %s96, %s98
      %p102 = scmp.eq.s32.totalorder %s22, 0
      %p103 = por %p101, %p102
      %p104 = scmp.ne.s32.totalorder %s96, %s98
      %p105 = scmp.eq.s32.totalorder %s27, 7
      %p106 = por %p104, %p105
      %p107 = scmp.ne.s32.totalorder %s98, %s99
      %p108 = scmp.eq.s32.totalorder %s27, 0
      %p109 = por %p107, %p108
      %p110 = scmp.ne.s32.totalorder %s98, %s99
      %p111 = scmp.eq.s32.totalorder %s28, 7
      %p112 = por %p110, %p111
      %p114 = scmp.ne.s32.totalorder %s99, %s113
      %p115 = scmp.eq.s32.totalorder %s28, 0
      %p116 = por %p114, %p115
      %s118 = sadd.s32 %s117, 1
      %p121 = scmp.eq.s32.totalorder %s22, 7
      %p122 = scmp.ne.s32.totalorder %s117, %s119
      %p123 = scmp.eq.s32.totalorder %s22, 0
      %p124 = por %p122, %p123
      %p125 = scmp.ne.s32.totalorder %s117, %s119
      %p126 = scmp.eq.s32.totalorder %s27, 7
      %p127 = por %p125, %p126
      %p128 = scmp.ne.s32.totalorder %s119, %s120
      %p129 = scmp.eq.s32.totalorder %s27, 0
      %p130 = por %p128, %p129
      %p131 = scmp.ne.s32.totalorder %s119, %s120
      %p132 = scmp.eq.s32.totalorder %s28, 7
      %p133 = por %p131, %p132
      %p135 = scmp.ne.s32.totalorder %s120, %s134
      %p136 = scmp.eq.s32.totalorder %s28, 0
      %p137 = por %p135, %p136
      %s139 = sadd.s32 %s138, 1
      %p142 = scmp.eq.s32.totalorder %s22, 7
      %p143 = scmp.ne.s32.totalorder %s138, %s140
      %p144 = scmp.eq.s32.totalorder %s22, 0
      %p145 = por %p143, %p144
      %p146 = scmp.ne.s32.totalorder %s138, %s140
      %p147 = scmp.eq.s32.totalorder %s27, 7
      %p148 = por %p146, %p147
      %p149 = scmp.ne.s32.totalorder %s140, %s141
      %p150 = scmp.eq.s32.totalorder %s27, 0
      %p151 = por %p149, %p150
      %p152 = scmp.ne.s32.totalorder %s140, %s141
      %p153 = scmp.eq.s32.totalorder %s28, 7
      %p154 = por %p152, %p153
      %p156 = scmp.ne.s32.totalorder %s141, %s155
      %p157 = scmp.eq.s32.totalorder %s28, 0
      %p158 = por %p156, %p157
      %s159 = ssub.s32 %s30, %s37
      %s160 = ssub.s32 %s29, %s41
      %s161 = sor.u32 %s159, %s160
      %p162 = scmp.eq.s32.totalorder %s161, 0
      %s164 = sadd.s32 %s163, 1
      %s165 = scalar_select %p162, %s163, %s164
      %p168 = pneg %p162
      %p169 = scmp.eq.s32.totalorder %s22, 7
      %p170 = por %p168, %p169
      %p171 = scmp.ne.s32.totalorder %s163, %s166
      %p172 = scmp.eq.s32.totalorder %s22, 0
      %p173 = por %p171, %p172
      %p174 = scmp.ne.s32.totalorder %s163, %s166
      %p175 = scmp.eq.s32.totalorder %s27, 7
      %p176 = por %p174, %p175
      %p177 = scmp.ne.s32.totalorder %s166, %s167
      %p178 = scmp.eq.s32.totalorder %s27, 0
      %p179 = por %p177, %p178
      %p180 = scmp.ne.s32.totalorder %s166, %s167
      %p181 = scmp.eq.s32.totalorder %s28, 7
      %p182 = por %p180, %p181
      %p184 = scmp.ne.s32.totalorder %s167, %s183
      %p185 = scmp.eq.s32.totalorder %s28, 0
      %p186 = por %p184, %p185
      %s187 = ssub.s32 %s29, %s41
      %p188 = scmp.eq.s32.totalorder %s187, 0
      %s190 = sadd.s32 %s189, 1
      %s191 = scalar_select %p188, %s189, %s190
      %p194 = pneg %p188
      %p195 = scmp.eq.s32.totalorder %s22, 7
      %p196 = por %p194, %p195
      %p197 = scmp.ne.s32.totalorder %s189, %s192
      %p198 = scmp.eq.s32.totalorder %s22, 0
      %p199 = por %p197, %p198
      %p200 = scmp.ne.s32.totalorder %s189, %s192
      %p201 = scmp.eq.s32.totalorder %s27, 7
      %p202 = por %p200, %p201
      %p203 = scmp.ne.s32.totalorder %s192, %s193
      %p204 = scmp.eq.s32.totalorder %s27, 0
      %p205 = por %p203, %p204
      %p206 = scmp.ne.s32.totalorder %s192, %s193
      %p207 = scmp.eq.s32.totalorder %s28, 7
      %p208 = por %p206, %p207
      %p210 = scmp.ne.s32.totalorder %s193, %s209
      %p211 = scmp.eq.s32.totalorder %s28, 0
      %p212 = por %p210, %p211
      %p213 = scmp.le.s32.totalorder 1, %s22
      %p214 = scmp.lt.s32.totalorder %s22, 9
      %p215 = pnand %p213, %p214
      %p216 = pneg %p215
      // Predicated region
      $region9: #{tpu_custom_call.1} parent=5 // pred_check
        _
      $region10: #{tpu_custom_call.1} parent=5 // pred_check_branch
        %218 = sbr.rel (%p215) target = $region12
      $region11: #{tpu_custom_call.1} parent=5 // pred_region
        %s219 = ssub.s32 %s22, 1
        // Predicated region
        $region13: #{tpu_custom_call.1} parent=11 // pred_check
          %p220 = pneg %p88
        $region14: #{tpu_custom_call.1} parent=11 // pred_check_branch
          %222 = sbr.rel (%p220) target = $region16
        $region15: #{tpu_custom_call.1} parent=11 // pred_region
          %224 = vsyncadd [#allocation7], 0
          %s225 = smul.addr %s31, 8
          %s226 = scalar_lea.hbm %s1, %s225
          %s228 = sshll.u32 %s226, 4
          %s229 = int_to_ptr.hbm [resolvable:$true] %s228
          %s230 = sshll.u32 [#allocation6], 4
          %s231 = int_to_ptr.vmem [resolvable:$true] %s230
          %233 = dma.hbm_to_vmem [thread:$0]  %s229, 128, %s231, [#allocation7]
        $region16: #{tpu_custom_call.1} parent=11 // pred_fallthru
          _
        // Predicated region
        $region17: #{tpu_custom_call.1} parent=11 // pred_check
          %p234 = pneg %p109
        $region18: #{tpu_custom_call.1} parent=11 // pred_check_branch
          %236 = sbr.rel (%p234) target = $region20
        $region19: #{tpu_custom_call.1} parent=11 // pred_region
          %238 = vsyncadd [#allocation7], 0
          %s239 = sshll.u32 %s2, 4
          %s240 = int_to_ptr.hbm [resolvable:$true] %s239
          %s241 = sshll.u32 [#allocation8], 4
          %s242 = int_to_ptr.vmem [resolvable:$true] %s241
          %247 = dma.hbm_to_vmem [thread:$0]  %s240, 4096, %s242, [#allocation7], 256, 256, 16
        $region20: #{tpu_custom_call.1} parent=11 // pred_fallthru
          _
        // Predicated region
        $region21: #{tpu_custom_call.1} parent=11 // pred_check
          %p248 = pneg %p130
        $region22: #{tpu_custom_call.1} parent=11 // pred_check_branch
          %250 = sbr.rel (%p248) target = $region24
        $region23: #{tpu_custom_call.1} parent=11 // pred_region
          %252 = vsyncadd [#allocation10], 0
          %s253 = sshll.u32 %s3, 4
          %s254 = int_to_ptr.hbm [resolvable:$true] %s253
          %s255 = sshll.u32 [#allocation9], 4
          %s256 = int_to_ptr.vmem [resolvable:$true] %s255
          %261 = dma.hbm_to_vmem [thread:$0]  %s254, 4096, %s256, [#allocation10], 256, 256, 16
        $region24: #{tpu_custom_call.1} parent=11 // pred_fallthru
          _
        // Predicated region
        $region25: #{tpu_custom_call.1} parent=11 // pred_check
          %p262 = pneg %p151
        $region26: #{tpu_custom_call.1} parent=11 // pred_check_branch
          %264 = sbr.rel (%p262) target = $region28
        $region27: #{tpu_custom_call.1} parent=11 // pred_region
          _
        $region28: #{tpu_custom_call.1} parent=11 // pred_fallthru
          _
      $region12: #{tpu_custom_call.1} parent=5 // pred_fallthru
        _
      %p265 = scmp.lt.s32.totalorder %s22, 8
      // Predicated region
      $region29: #{tpu_custom_call.1} parent=5 // pred_check
        %p266 = pneg %p265
      $region30: #{tpu_custom_call.1} parent=5 // pred_check_branch
        %268 = sbr.rel (%p266) target = $region32
      $region31: #{tpu_custom_call.1} parent=5 // pred_region
        // Predicated region
        $region33: #{tpu_custom_call.1} parent=31 // pred_check
          %p269 = pneg %p56
        $region34: #{tpu_custom_call.1} parent=31 // pred_check_branch
          %271 = sbr.rel (%p269) target = $region36
        $region35: #{tpu_custom_call.1} parent=31 // pred_region
          %s272 = sand.u32 %s46, 1
          %s273 = scalar_lea.sflag [#allocation4], %s272
          %s274 = sand.u32 %s46, 1
          %s275 = smul.addr %s274, 8
          %s276 = scalar_lea.vmem [#allocation3], %s275
          %278 = vsyncadd %s273, 0
          %s279 = sadd.s32 %s29, %s30
          %s280 = smul.addr %s279, 8
          %s281 = scalar_lea.hbm %s0, %s280
          %s283 = sshll.u32 %s281, 4
          %s284 = int_to_ptr.hbm [resolvable:$true] %s283
          %s285 = sshll.u32 %s276, 4
          %s286 = int_to_ptr.vmem [resolvable:$true] %s285
          %288 = dma.hbm_to_vmem [thread:$0]  %s284, 128, %s286, %s273
        $region36: #{tpu_custom_call.1} parent=31 // pred_fallthru
          _
      $region32: #{tpu_custom_call.1} parent=5 // pred_fallthru
        _
      %p289 = scmp.le.s32.totalorder 1, %s22
      %p290 = scmp.lt.s32.totalorder %s22, 9
      %p291 = pnand %p289, %p290
      %p292 = pneg %p291
      // Predicated region
      $region37: #{tpu_custom_call.1} parent=5 // pred_check
        _
      $region38: #{tpu_custom_call.1} parent=5 // pred_check_branch
        %294 = sbr.rel (%p291) target = $region40
      $region39: #{tpu_custom_call.1} parent=5 // pred_region
        %s295 = ssub.s32 %s22, 1
        %s296 = sand.u32 %s49, 1
        %s297 = scalar_lea.sflag [#allocation4], %s296
        %s298 = sand.u32 %s49, 1
        %s299 = smul.addr %s298, 8
        %s300 = scalar_lea.vmem [#allocation3], %s299
        // Predicated region
        $region41: #{tpu_custom_call.1} parent=39 // pred_check
          %p301 = pneg %p62
        $region42: #{tpu_custom_call.1} parent=39 // pred_check_branch
          %303 = sbr.rel (%p301) target = $region44
        $region43: #{tpu_custom_call.1} parent=39 // pred_region
          %305 = dma.done %s297, 128
        $region44: #{tpu_custom_call.1} parent=39 // pred_fallthru
          _
        // Predicated region
        $region45: #{tpu_custom_call.1} parent=39 // pred_check
          %p306 = pneg %p88
        $region46: #{tpu_custom_call.1} parent=39 // pred_check_branch
          %308 = sbr.rel (%p306) target = $region48
        $region47: #{tpu_custom_call.1} parent=39 // pred_region
          %310 = dma.done [#allocation7], 128
        $region48: #{tpu_custom_call.1} parent=39 // pred_fallthru
          _
        // Predicated region
        $region49: #{tpu_custom_call.1} parent=39 // pred_check
          %p311 = pneg %p109
        $region50: #{tpu_custom_call.1} parent=39 // pred_check_branch
          %313 = sbr.rel (%p311) target = $region52
        $region51: #{tpu_custom_call.1} parent=39 // pred_region
          %315 = dma.done [#allocation7], 4096
        $region52: #{tpu_custom_call.1} parent=39 // pred_fallthru
          _
        // Predicated region
        $region53: #{tpu_custom_call.1} parent=39 // pred_check
          %p316 = pneg %p130
        $region54: #{tpu_custom_call.1} parent=39 // pred_check_branch
          %318 = sbr.rel (%p316) target = $region56
        $region55: #{tpu_custom_call.1} parent=39 // pred_region
          %320 = dma.done [#allocation10], 4096
        $region56: #{tpu_custom_call.1} parent=39 // pred_fallthru
          _
        %s321 = sand.u32 %s49, 1
        %s322 = scalar_lea.sflag [#allocation4], %s321
        %s323 = sand.u32 %s49, 1
        %s324 = smul.addr %s323, 8
        %s325 = scalar_lea.vmem [#allocation3], %s324
        %p326 = pneg %p62
        %p327 = pneg %p59
        %p328 = pneg %p88
        %p329 = pneg %p85
        %p330 = pneg %p109
        %p331 = pneg %p106
        %p332 = pneg %p130
        %p333 = pneg %p127
        %p334 = pneg %p151
        %p335 = pneg %p148
        %p336 = pneg %p179
        %p337 = pneg %p176
        %s338 = sand.u32 %s166, 1
        %s339 = scalar_lea.sflag [#allocation5], %s338
        %s340 = sand.u32 %s166, 1
        %s341 = smul.addr %s340, 8
        %s342 = scalar_lea.vmem [#allocation11], %s341
        %p343 = pneg %p205
        %p344 = pneg %p202
        %p345 = scmp.eq.s32.totalorder %s32, 0
        // Predicated region
        $region57: #{tpu_custom_call.1} parent=39 // pred_check
          %p346 = pneg %p345
        $region58: #{tpu_custom_call.1} parent=39 // pred_check_branch
          %348 = sbr.rel (%p346) target = $region60
        $region59: #{tpu_custom_call.1} parent=39 // pred_region
          %v349 = vld [vmem:[#allocation6] sm:$0xff]
          %350 = vst [vmem:[#allocation2] sm:$0xff] %v349
        $region60: #{tpu_custom_call.1} parent=39 // pred_fallthru
          _
        %v351 = vld [vmem:[%s300] sm:$0xff]
        %v352 = vld [vmem:[#allocation2] sm:$0xff]
        %v353 = vld [vmem:[#allocation8] sm:$0xff]
        %v354 = vld [vmem:[#allocation8 + $0x8] sm:$0xff]
        %v355 = vld [vmem:[#allocation8 + $0x10] sm:$0xff]
        %v356 = vld [vmem:[#allocation8 + $0x18] sm:$0xff]
        %v357 = vld [vmem:[#allocation8 + $0x20] sm:$0xff]
        %v358 = vld [vmem:[#allocation8 + $0x28] sm:$0xff]
        %v359 = vld [vmem:[#allocation8 + $0x30] sm:$0xff]
        %v360 = vld [vmem:[#allocation8 + $0x38] sm:$0xff]
        %v361 = vld [vmem:[#allocation8 + $0x40] sm:$0xff]
        %v362 = vld [vmem:[#allocation8 + $0x48] sm:$0xff]
        %v363 = vld [vmem:[#allocation8 + $0x50] sm:$0xff]
        %v364 = vld [vmem:[#allocation8 + $0x58] sm:$0xff]
        %v365 = vld [vmem:[#allocation8 + $0x60] sm:$0xff]
        %v366 = vld [vmem:[#allocation8 + $0x68] sm:$0xff]
        %v367 = vld [vmem:[#allocation8 + $0x70] sm:$0xff]
        %v368 = vld [vmem:[#allocation8 + $0x78] sm:$0xff]
        %v369 = vld [vmem:[#allocation8 + $0x80] sm:$0xff]
        %v370 = vld [vmem:[#allocation8 + $0x88] sm:$0xff]
        %v371 = vld [vmem:[#allocation8 + $0x90] sm:$0xff]
        %v372 = vld [vmem:[#allocation8 + $0x98] sm:$0xff]
        %v373 = vld [vmem:[#allocation8 + $0xa0] sm:$0xff]
        %v374 = vld [vmem:[#allocation8 + $0xa8] sm:$0xff]
        %v375 = vld [vmem:[#allocation8 + $0xb0] sm:$0xff]
        %v376 = vld [vmem:[#allocation8 + $0xb8] sm:$0xff]
        %v377 = vld [vmem:[#allocation8 + $0xc0] sm:$0xff]
        %v378 = vld [vmem:[#allocation8 + $0xc8] sm:$0xff]
        %v379 = vld [vmem:[#allocation8 + $0xd0] sm:$0xff]
        %v380 = vld [vmem:[#allocation8 + $0xd8] sm:$0xff]
        %v381 = vld [vmem:[#allocation8 + $0xe0] sm:$0xff]
        %v382 = vld [vmem:[#allocation8 + $0xe8] sm:$0xff]
        %v383 = vld [vmem:[#allocation8 + $0xf0] sm:$0xff]
        %v384 = vld [vmem:[#allocation8 + $0xf8] sm:$0xff]
        %v385 = vld [vmem:[#allocation9] sm:$0xff]
        %v386 = vld [vmem:[#allocation9 + $0x8] sm:$0xff]
        %v387 = vld [vmem:[#allocation9 + $0x10] sm:$0xff]
        %v388 = vld [vmem:[#allocation9 + $0x18] sm:$0xff]
        %v389 = vld [vmem:[#allocation9 + $0x20] sm:$0xff]
        %v390 = vld [vmem:[#allocation9 + $0x28] sm:$0xff]
        %v391 = vld [vmem:[#allocation9 + $0x30] sm:$0xff]
        %v392 = vld [vmem:[#allocation9 + $0x38] sm:$0xff]
        %v393 = vld [vmem:[#allocation9 + $0x40] sm:$0xff]
        %v394 = vld [vmem:[#allocation9 + $0x48] sm:$0xff]
        %v395 = vld [vmem:[#allocation9 + $0x50] sm:$0xff]
        %v396 = vld [vmem:[#allocation9 + $0x58] sm:$0xff]
        %v397 = vld [vmem:[#allocation9 + $0x60] sm:$0xff]
        %v398 = vld [vmem:[#allocation9 + $0x68] sm:$0xff]
        %v399 = vld [vmem:[#allocation9 + $0x70] sm:$0xff]
        %v400 = vld [vmem:[#allocation9 + $0x78] sm:$0xff]
        %v401 = vld [vmem:[#allocation9 + $0x80] sm:$0xff]
        %v402 = vld [vmem:[#allocation9 + $0x88] sm:$0xff]
        %v403 = vld [vmem:[#allocation9 + $0x90] sm:$0xff]
        %v404 = vld [vmem:[#allocation9 + $0x98] sm:$0xff]
        %v405 = vld [vmem:[#allocation9 + $0xa0] sm:$0xff]
        %v406 = vld [vmem:[#allocation9 + $0xa8] sm:$0xff]
        %v407 = vld [vmem:[#allocation9 + $0xb0] sm:$0xff]
        %v408 = vld [vmem:[#allocation9 + $0xb8] sm:$0xff]
        %v409 = vld [vmem:[#allocation9 + $0xc0] sm:$0xff]
        %v410 = vld [vmem:[#allocation9 + $0xc8] sm:$0xff]
        %v411 = vld [vmem:[#allocation9 + $0xd0] sm:$0xff]
        %v412 = vld [vmem:[#allocation9 + $0xd8] sm:$0xff]
        %v413 = vld [vmem:[#allocation9 + $0xe0] sm:$0xff]
        %v414 = vld [vmem:[#allocation9 + $0xe8] sm:$0xff]
        %v415 = vld [vmem:[#allocation9 + $0xf0] sm:$0xff]
        %v416 = vld [vmem:[#allocation9 + $0xf8] sm:$0xff]
        %417 = vmatpush.msra.mxu0 %v415
        %418 = vmatpush.msra.mxu0 %v413
        %419 = vmatpush.msra.mxu0 %v411
        %420 = vmatpush.msra.mxu0 %v409
        %421 = vmatpush.msra.mxu0 %v407
        %422 = vmatpush.msra.mxu0 %v405
        %423 = vmatpush.msra.mxu0 %v403
        %424 = vmatpush.msra.mxu0 %v401
        %425 = vmatpush.msra.mxu0 %v399
        %426 = vmatpush.msra.mxu0 %v397
        %427 = vmatpush.msra.mxu0 %v395
        %428 = vmatpush.msra.mxu0 %v393
        %429 = vmatpush.msra.mxu0 %v391
        %430 = vmatpush.msra.mxu0 %v389
        %431 = vmatpush.msra.mxu0 %v387
        %432 = vmatpush.msra.mxu0 %v385
        %433 = vmatmul.f32.gmra.mxu0 %v352
        %v434 = vpop.f32.mrf.mxu0
        %v435 = vadd.f32 0.0, %v434
        %436 = vdwg.mxu0
        %437 = vmatpush.msra.mxu0 %v416
        %438 = vmatpush.msra.mxu0 %v414
        %439 = vmatpush.msra.mxu0 %v412
        %440 = vmatpush.msra.mxu0 %v410
        %441 = vmatpush.msra.mxu0 %v408
        %442 = vmatpush.msra.mxu0 %v406
        %443 = vmatpush.msra.mxu0 %v404
        %444 = vmatpush.msra.mxu0 %v402
        %445 = vmatpush.msra.mxu0 %v400
        %446 = vmatpush.msra.mxu0 %v398
        %447 = vmatpush.msra.mxu0 %v396
        %448 = vmatpush.msra.mxu0 %v394
        %449 = vmatpush.msra.mxu0 %v392
        %450 = vmatpush.msra.mxu0 %v390
        %451 = vmatpush.msra.mxu0 %v388
        %452 = vmatpush.msra.mxu0 %v386
        %453 = vmatmul.f32.gmra.mxu0 %v352
        %v454 = vpop.f32.mrf.mxu0
        %v455 = vadd.f32 0.0, %v454
        %456 = vdwg.mxu0
        %457 = vmatpush.msra.mxu0 %v383
        %458 = vmatpush.msra.mxu0 %v381
        %459 = vmatpush.msra.mxu0 %v379
        %460 = vmatpush.msra.mxu0 %v377
        %461 = vmatpush.msra.mxu0 %v375
        %462 = vmatpush.msra.mxu0 %v373
        %463 = vmatpush.msra.mxu0 %v371
        %464 = vmatpush.msra.mxu0 %v369
        %465 = vmatpush.msra.mxu0 %v367
        %466 = vmatpush.msra.mxu0 %v365
        %467 = vmatpush.msra.mxu0 %v363
        %468 = vmatpush.msra.mxu0 %v361
        %469 = vmatpush.msra.mxu0 %v359
        %470 = vmatpush.msra.mxu0 %v357
        %471 = vmatpush.msra.mxu0 %v355
        %472 = vmatpush.msra.mxu0 %v353
        %473 = vmatmul.f32.gmra.mxu0 %v351
        %v474 = vpop.f32.mrf.mxu0
        %v475 = vadd.f32 %v435, %v474
        %476 = vdwg.mxu0
        %477 = vmatpush.msra.mxu0 %v384
        %478 = vmatpush.msra.mxu0 %v382
        %479 = vmatpush.msra.mxu0 %v380
        %480 = vmatpush.msra.mxu0 %v378
        %481 = vmatpush.msra.mxu0 %v376
        %482 = vmatpush.msra.mxu0 %v374
        %483 = vmatpush.msra.mxu0 %v372
        %484 = vmatpush.msra.mxu0 %v370
        %485 = vmatpush.msra.mxu0 %v368
        %486 = vmatpush.msra.mxu0 %v366
        %487 = vmatpush.msra.mxu0 %v364
        %488 = vmatpush.msra.mxu0 %v362
        %489 = vmatpush.msra.mxu0 %v360
        %490 = vmatpush.msra.mxu0 %v358
        %491 = vmatpush.msra.mxu0 %v356
        %492 = vmatpush.msra.mxu0 %v354
        %493 = vmatmul.f32.gmra.mxu0 %v351
        %v494 = vpop.f32.mrf.mxu0
        %v495 = vadd.f32 %v455, %v494
        %496 = vdwg.mxu0
        %v497 = vld [vmem:[%s4] sm:$0x3]
        %v499 = vperm.slane %v497, 0
        %v500 = vperm.slane %v497, 1
        %v503 = vadd.f32 %v475, %v499
        %v504 = vadd.f32 %v495, %v500
        %505 = vmax.xlane.f32.xlu0 %v504
        %v506 = vpop.xlane.xlu0 %505
        %v507 = vsub.f32 %v504, %v506
        %v508 = vmul.f32 %v507, 1.442695
        %v509 = vpow.pop %v508
        %510 = vadd.xlane.f32.xlu0 %v509
        %v511 = vpop.xlane.xlu0 %510
        %v512 = vlog2.pop %v511
        %v513 = vmul.f32 %v512, 0.6931472
        %v514 = vsub.f32 %v507, %v513
        %515 = vst [vmem:[%s342] sm:$0xff] %v514
        %516 = vst [vmem:[#allocation2] sm:$0xff] %v503
        %p517 = scmp.eq.s32.totalorder %s32, 7
        // Predicated region
        $region61: #{tpu_custom_call.1} parent=39 // pred_check
          %p518 = pneg %p517
        $region62: #{tpu_custom_call.1} parent=39 // pred_check_branch
          %520 = sbr.rel (%p518) target = $region64
        $region63: #{tpu_custom_call.1} parent=39 // pred_region
          %v521 = vld [vmem:[#allocation2] sm:$0xff]
          %522 = vst [vmem:[#allocation12] sm:$0xff] %v521
        $region64: #{tpu_custom_call.1} parent=39 // pred_fallthru
          _
        %s523 = sand.u32 %s166, 1
        %s524 = scalar_lea.sflag [#allocation5], %s523
        %s525 = sand.u32 %s166, 1
        %s526 = smul.addr %s525, 8
        %s527 = scalar_lea.vmem [#allocation11], %s526
        // Predicated region
        $region65: #{tpu_custom_call.1} parent=39 // pred_check
          %p528 = pneg %p176
        $region66: #{tpu_custom_call.1} parent=39 // pred_check_branch
          %530 = sbr.rel (%p528) target = $region68
        $region67: #{tpu_custom_call.1} parent=39 // pred_region
          %532 = vsyncadd %s524, 0
          %s533 = sadd.s32 %s31, %s32
          %s534 = smul.addr %s533, 8
          %s535 = scalar_lea.hbm %s5, %s534
          %s537 = sshll.u32 %s527, 4
          %s538 = int_to_ptr.vmem [resolvable:$true] %s537
          %s539 = sshll.u32 %s535, 4
          %s540 = int_to_ptr.hbm [resolvable:$true] %s539
          %542 = dma.vmem_to_hbm [thread:$0]  %s538, 128, %s540, %s524
        $region68: #{tpu_custom_call.1} parent=39 // pred_fallthru
          _
        // Predicated region
        $region69: #{tpu_custom_call.1} parent=39 // pred_check
          %p543 = pneg %p202
        $region70: #{tpu_custom_call.1} parent=39 // pred_check_branch
          %545 = sbr.rel (%p543) target = $region72
        $region71: #{tpu_custom_call.1} parent=39 // pred_region
          %547 = vsyncadd [#allocation13], 0
          %s548 = smul.addr %s31, 8
          %s549 = scalar_lea.hbm %s6, %s548
          %s551 = sshll.u32 [#allocation12], 4
          %s552 = int_to_ptr.vmem [resolvable:$true] %s551
          %s553 = sshll.u32 %s549, 4
          %s554 = int_to_ptr.hbm [resolvable:$true] %s553
          %556 = dma.vmem_to_hbm [thread:$0]  %s552, 128, %s554, [#allocation13]
        $region72: #{tpu_custom_call.1} parent=39 // pred_fallthru
          _
        // Predicated region
        $region73: #{tpu_custom_call.1} parent=39 // pred_check
          %p557 = pneg %p202
        $region74: #{tpu_custom_call.1} parent=39 // pred_check_branch
          %559 = sbr.rel (%p557) target = $region76
        $region75: #{tpu_custom_call.1} parent=39 // pred_region
          %561 = dma.done [#allocation13], 128
        $region76: #{tpu_custom_call.1} parent=39 // pred_fallthru
          _
      $region40: #{tpu_custom_call.1} parent=5 // pred_fallthru
        _
      %p562 = scmp.le.s32.totalorder 2, %s22
      // Predicated region
      $region77: #{tpu_custom_call.1} parent=5 // pred_check
        %p563 = pneg %p562
      $region78: #{tpu_custom_call.1} parent=5 // pred_check_branch
        %565 = sbr.rel (%p563) target = $region80
      $region79: #{tpu_custom_call.1} parent=5 // pred_region
        %s566 = ssub.s32 %s22, 2
        // Predicated region
        $region81: #{tpu_custom_call.1} parent=79 // pred_check
          %p567 = pneg %p182
        $region82: #{tpu_custom_call.1} parent=79 // pred_check_branch
          %569 = sbr.rel (%p567) target = $region84
        $region83: #{tpu_custom_call.1} parent=79 // pred_region
          %s570 = sand.u32 %s167, 1
          %s571 = scalar_lea.sflag [#allocation5], %s570
          %s572 = sand.u32 %s167, 1
          %s573 = smul.addr %s572, 8
          %s574 = scalar_lea.vmem [#allocation11], %s573
          %576 = dma.done %s571, 128
        $region84: #{tpu_custom_call.1} parent=79 // pred_fallthru
          _
      $region80: #{tpu_custom_call.1} parent=5 // pred_fallthru
        _
    $region6: #{tpu_custom_call.1} parent=1 // loop_footer
      %s26 = sadd.s32 1, %s22
    $region7: #{tpu_custom_call.1} parent=1 // loop_footer_branch
      %21 = sbr.rel target = $region3
    $region8: #{tpu_custom_call.1} parent=1 // loop_exit
      _
    %577 = vsyncpa [#allocation4], 1
    %s578 = scalar_lea.sflag [#allocation4], 1
    %579 = vsyncpa %s578, 1
    %580 = vsyncpa [#allocation7], 1
    %581 = vsyncpa [#allocation10], 1
    %582 = vsyncpa [#allocation5], 1
    %s583 = scalar_lea.sflag [#allocation5], 1
    %584 = vsyncpa %s583, 1
    %585 = vsyncpa [#allocation13], 1

</llo_original>
